<compile_context>
chip_gen: v5e
topology: v5e:2x2
jax: 0.10.0
libtpu: 0.0.40
codegen_flags: <defaults>
</compile_context>

<pallas_src>
import math
from functools import partial

import numpy as np
import jax
import jax.numpy as jnp
from jax.experimental import pallas as pl
from jax.experimental.pallas import tpu as pltpu

# ----------------------------- config (small, consistent with the module) ----
SAMPLING_RATE = 24000
HOP_SIZE = 32
FFT_SIZE = 128
WIN_LENGTH = 128
NUM_MELS = 16
FMIN = 80.0
FMAX = 7600.0
EPS = 1e-10

AUX_CONTEXT_WINDOW = 2
UPSAMPLE_SCALES = (4, 8)          # prod == HOP_SIZE
UPSAMPLE_FACTOR = int(np.prod(UPSAMPLE_SCALES))
RESIDUAL_CHANNELS = 16
GATE_CHANNELS = 32
SKIP_CHANNELS = 16
LAYERS = 6
STACKS = 3

_LOG10_INV = np.float32(1.0 / np.log(10.0))
_SQRT_HALF = np.float32(math.sqrt(0.5))

F_TILE = 512                      # output frames per grid step (resamplers)
MEL_TILE = 256                    # mel frames per grid step (log-mel)


# ----------------------------- Pallas helpers --------------------------------
def _fs(shape):
    nd = len(shape)
    return pl.BlockSpec(shape, lambda i, _nd=nd: (0,) * _nd)


_CP_SEQ = pltpu.CompilerParams(dimension_semantics=("arbitrary",))
_CP_PAR = pltpu.CompilerParams(dimension_semantics=("parallel",))


# ----------------------------- resampling (torchaudio sinc_interp_hann) ------
def _sinc_resample_filter(orig, new, lowpass_filter_width=6, rolloff=0.99):
    base_freq = min(orig, new) * rolloff
    width = int(math.ceil(lowpass_filter_width * orig / base_freq))
    idx = np.arange(-width, width + orig, dtype=np.float64) / orig
    t = np.arange(0, -new, -1, dtype=np.float64)[:, None] / new + idx[None, :]
    t = t * base_freq
    t = np.clip(t, -lowpass_filter_width, lowpass_filter_width)
    window = np.cos(t * math.pi / lowpass_filter_width / 2.0) ** 2
    t = t * math.pi
    scale = base_freq / orig
    kern = np.where(t == 0.0, 1.0, np.sin(t) / np.where(t == 0.0, 1.0, t))
    kern = kern * window * scale
    return kern.astype(np.float32), width            # (new, kw), width


def _resample_kernel(frames_ref, kern_ref, o_ref):
    # frames_ref block (kw_pad, F_TILE): frames[k, f] = xp[f*orig + k]
    # (built outside as stacked deinterleaves, DMA'd per tile, lane-dense).
    # One polyphase matmul -> (new, F_TILE), time lane-dense.
    o_ref[...] = jnp.dot(kern_ref[...], frames_ref[...],
                         preferred_element_type=jnp.float32)


def resample_pallas(x, orig_freq, new_freq):
    g = math.gcd(orig_freq, new_freq)
    orig, new = orig_freq // g, new_freq // g
    kern, width = _sinc_resample_filter(orig, new)   # (new, kw)
    kw = kern.shape[1]
    nblocks = (kw + orig - 1) // orig
    kw_pad = nblocks * orig
    kern_pad = np.zeros((new, kw_pad), np.float32)
    kern_pad[:, :kw] = kern                          # zero cols beyond kw

    T = int(x.shape[0])
    len_xp = T + 2 * width + orig
    nf = (len_xp - kw) // orig + 1                   # true output frame count
    n_tiles = (nf + F_TILE - 1) // F_TILE
    nf_pad = n_tiles * F_TILE
    LP = (nf_pad + nblocks) * orig
    xp = jnp.pad(x, (width, LP - T - width))         # zero pad (as torchaudio)
    # Overlapping-frame matrix via shifted deinterleaves (layout plumbing,
    # no gather): frames[b*orig + r, f] = xp[(f + b)*orig + r].
    frames = jnp.stack(
        [xp[b * orig:b * orig + nf_pad * orig].reshape(nf_pad, orig).T
         for b in range(nblocks)], axis=0).reshape(kw_pad, nf_pad)

    out = pl.pallas_call(
        _resample_kernel,
        grid=(n_tiles,),
        in_specs=[pl.BlockSpec((kw_pad, F_TILE), lambda i: (0, i)),
                  _fs((new, kw_pad))],
        out_specs=pl.BlockSpec((new, F_TILE), lambda i: (0, i)),
        out_shape=jax.ShapeDtypeStruct((new, nf_pad), jnp.float32),
        compiler_params=_CP_PAR,
    )(frames, jnp.asarray(kern_pad))
    target = int(math.ceil(new * T / orig))
    return out.T.reshape(-1)[:target]                # frame-major, phase-minor


# ----------------------------- log-mel front-end ------------------------------
def _hz_to_mel(f):
    f = np.asarray(f, dtype=np.float64)
    f_sp = 200.0 / 3
    mels = f / f_sp
    min_log_hz = 1000.0
    min_log_mel = min_log_hz / f_sp
    logstep = np.log(6.4) / 27.0
    return np.where(f >= min_log_hz,
                    min_log_mel + np.log(np.maximum(f, 1e-10) / min_log_hz) / logstep,
                    mels)


def _mel_to_hz(m):
    m = np.asarray(m, dtype=np.float64)
    f_sp = 200.0 / 3
    freqs = f_sp * m
    min_log_hz = 1000.0
    min_log_mel = min_log_hz / f_sp
    logstep = np.log(6.4) / 27.0
    return np.where(m >= min_log_mel,
                    min_log_hz * np.exp(logstep * (m - min_log_mel)), freqs)


def mel_filterbank(sr, n_fft, n_mels, fmin, fmax):
    n_bins = 1 + n_fft // 2
    fftfreqs = np.linspace(0.0, sr / 2.0, n_bins)
    mel_f = _mel_to_hz(np.linspace(_hz_to_mel(fmin), _hz_to_mel(fmax), n_mels + 2))
    fdiff = np.diff(mel_f)
    ramps = mel_f[:, None] - fftfreqs[None, :]
    weights = np.zeros((n_mels, n_bins), dtype=np.float64)
    for i in range(n_mels):
        lower = -ramps[i] / fdiff[i]
        upper = ramps[i + 2] / fdiff[i + 1]
        weights[i] = np.maximum(0.0, np.minimum(lower, upper))
    enorm = 2.0 / (mel_f[2:n_mels + 2] - mel_f[:n_mels])
    weights *= enorm[:, None]
    return weights.astype(np.float32)                # (n_mels, n_bins)


def _logmel_constants():
    N = FFT_SIZE
    n = np.arange(N, dtype=np.float64)
    win = (0.5 - 0.5 * np.cos(2.0 * np.pi * n / WIN_LENGTH)).astype(np.float32)
    nbins = N // 2 + 1
    f = np.arange(nbins, dtype=np.float64)
    ang = 2.0 * np.pi * f[:, None] * n[None, :] / N
    # channel-major [cos ; sin] DFT matrix, each half zero-padded to N rows so
    # the re/im sublane split lands on a multiple-of-8 (vreg) boundary.
    dftT = np.zeros((2 * N, N), np.float32)
    dftT[:nbins, :] = np.cos(ang)
    dftT[N:N + nbins, :] = np.sin(ang)
    melW = np.zeros((NUM_MELS, N), np.float32)
    melW[:, :nbins] = mel_filterbank(SAMPLING_RATE, N, NUM_MELS, FMIN, FMAX)
    return jnp.asarray(win)[:, None], jnp.asarray(dftT), jnp.asarray(melW)


def _logmel_kernel(frames_ref, win_ref, dftT_ref, melW_ref, mean_ref, scale_ref,
                   o_ref):
    # frames_ref block (N, MEL_TILE): frames[n, f] = xp[f*hop + n]  (lane-dense)
    n = win_ref.shape[0]
    w = frames_ref[...] * win_ref[...]
    spec = jnp.dot(dftT_ref[...], w, preferred_element_type=jnp.float32)  # (2N,t)
    re = spec[:n, :]
    im = spec[n:, :]
    mag = jnp.sqrt(re * re + im * im)
    mel = jnp.dot(melW_ref[...], mag, preferred_element_type=jnp.float32)
    logmel = jnp.log(jnp.maximum(mel, EPS)) * _LOG10_INV
    # normalize_before=True of model.inference is fused here
    o_ref[...] = (logmel - mean_ref[...]) / scale_ref[...]


def log_mel_feature(audio, mean, scale):
    N, hop = FFT_SIZE, HOP_SIZE
    xp = jnp.pad(audio, N // 2, mode="reflect")       # center=True, reflect
    L = int(xp.shape[0])
    nf = 1 + (L - N) // hop
    nblocks = N // hop
    n_tiles = (nf + MEL_TILE - 1) // MEL_TILE
    nf_pad = n_tiles * MEL_TILE
    LP = (nf_pad + nblocks) * hop
    xp = jnp.pad(xp, (0, LP - L))
    frames = jnp.stack(
        [xp[b * hop:b * hop + nf_pad * hop].reshape(nf_pad, hop).T
         for b in range(nblocks)], axis=0).reshape(N, nf_pad)
    win, dftT, melW = _logmel_constants()
    out = pl.pallas_call(
        _logmel_kernel,
        grid=(n_tiles,),
        in_specs=[pl.BlockSpec((N, MEL_TILE), lambda i: (0, i)),
                  _fs((N, 1)), _fs((2 * N, N)), _fs((NUM_MELS, N)),
                  _fs((NUM_MELS, 1)), _fs((NUM_MELS, 1))],
        out_specs=pl.BlockSpec((NUM_MELS, MEL_TILE), lambda i: (0, i)),
        out_shape=jax.ShapeDtypeStruct((NUM_MELS, nf_pad), jnp.float32),
        compiler_params=_CP_PAR,
    )(frames, win, dftT, melW, mean, scale)
    return out[:, :nf]                                # (NUM_MELS, nf) channel-major


# ----------------------------- generator (ParallelWaveGAN), fully fused ------
def _build_upsample_matrix(F, scales, weight_lists):
    """Fold Stretch2d(s) + Conv2d(1,1,(1,2s+1),pad=(0,s)) pairs into one (T,F)."""
    mat = np.eye(F, dtype=np.float64)
    length = F
    for s, ws in zip(scales, weight_lists):
        ws = np.asarray(ws, dtype=np.float64)                    # (2s+1,)
        stretch = np.zeros((length * s, length))
        stretch[np.arange(length * s), np.arange(length * s) // s] = 1.0
        tlen = length * s
        conv = np.zeros((tlen, tlen))
        for t in range(tlen):
            for k in range(2 * s + 1):
                j = t + k - s                                    # zero padding
                if 0 <= j < tlen:
                    conv[t, j] += ws[k]
        mat = conv @ stretch @ mat
        length = tlen
    return mat.astype(np.float32)                                # (F*prod, F)


def _generator_kernel(mel_ref, noise_ref, cinw_ref, upT_ref, fw_ref, fb_ref,
                      wg_ref, bg_ref, wos_ref, bos_ref,
                      lw1_ref, lb1_ref, lw2_ref, lb2_ref,
                      y_ref,
                      melp_scr, ctx_scr, inp_scr, xpad_scr, skip_scr,
                      *, dilations, dmax, acw, skip_scale):
    # Channel-major everywhere: (channels, time), time on the 128-lane axis.
    A, F = mel_ref.shape
    T = noise_ref.shape[1]
    R = fw_ref.shape[0]
    G = wg_ref.shape[1]
    G2 = G // 2
    S = skip_scr.shape[0]

    # --- ConvInUpsampleNetwork ------------------------------------------------
    # replicate ("edge") padding of the aux features for the context conv
    melp_scr[:, acw:acw + F] = mel_ref[...]
    for r in range(acw):
        melp_scr[:, r:r + 1] = mel_ref[:, 0:1]
        melp_scr[:, acw + F + r:acw + F + r + 1] = mel_ref[:, F - 1:F]
    # context-window stacking (kernel-tap major, channel minor) -> one matmul
    for k in range(2 * acw + 1):
        ctx_scr[k * A:(k + 1) * A, :] = melp_scr[:, k:k + F]
    c0 = jnp.dot(cinw_ref[...], ctx_scr[...],
                 preferred_element_type=jnp.float32)              # (A, F)
    # Stretch2d + (1, 2s+1) convs folded into one (F, T) matrix; output is the
    # aux slab of the gate input, time lane-dense.
    # TODO(synk): for long audio, replace with the banded/polyphase per-tile
    # form (O(F) weights) and tile T over a parallel grid axis (dmax halo).
    inp_scr[3 * R:3 * R + A, :] = jnp.dot(
        c0, upT_ref[...], preferred_element_type=jnp.float32)     # (A, T)

    # --- first conv: Conv1d(1, R, kernel=1) on the noise ------------------------
    xpad_scr[...] = jnp.zeros_like(xpad_scr)          # zero the dilation halo once
    xpad_scr[:, dmax:dmax + T] = noise_ref[...] * fw_ref[...] + fb_ref[...]

    # --- WaveNet residual stack, all state resident in VMEM --------------------
    skip_scr[...] = jnp.zeros_like(skip_scr)
    for l, d in enumerate(dilations):
        # dilated-conv taps via static lane slices of the zero-halo'd x
        inp_scr[0:R, :] = xpad_scr[:, dmax - d:dmax - d + T]          # x[t-d]
        inp_scr[R:2 * R, :] = xpad_scr[:, dmax:dmax + T]              # x[t]
        inp_scr[2 * R:3 * R, :] = xpad_scr[:, dmax + d:dmax + d + T]  # x[t+d]
        # dilated conv + aux 1x1 conv + BOTH gate halves in ONE matmul
        z = jnp.dot(wg_ref[l], inp_scr[...],
                    preferred_element_type=jnp.float32) + bg_ref[l]   # (G, T)
        g = jnp.tanh(z[:G2, :]) * jax.nn.sigmoid(z[G2:, :])           # (G2, T)
        # out-conv and skip-conv fused into ONE matmul, split on sublanes
        so = jnp.dot(wos_ref[l], g,
                     preferred_element_type=jnp.float32) + bos_ref[l]  # (R+S, T)
        xpad_scr[:, dmax:dmax + T] = (so[:R, :] + inp_scr[R:2 * R, :]) * _SQRT_HALF
        skip_scr[...] = skip_scr[...] + so[R:R + S, :]

    # --- last conv stack --------------------------------------------------------
    h = jnp.maximum(skip_scr[...] * skip_scale, 0.0)
    h = jnp.maximum(jnp.dot(lw1_ref[...], h,
                            preferred_element_type=jnp.float32) + lb1_ref[...], 0.0)
    y_ref[...] = jnp.dot(lw2_ref[...], h,
                         preferred_element_type=jnp.float32) + lb2_ref[...]


def generator_inference(mel_cm, noise, params):
    A, F = int(mel_cm.shape[0]), int(mel_cm.shape[1])
    T = F * UPSAMPLE_FACTOR
    R, S = RESIDUAL_CHANNELS, SKIP_CHANNELS
    G = GATE_CHANNELS
    G2 = G // 2
    L = LAYERS
    acw = AUX_CONTEXT_WINDOW
    Kc = 2 * acw + 1

    upT = jnp.asarray(
        _build_upsample_matrix(F, UPSAMPLE_SCALES, params["upsample_ws"]).T)  # (F,T)

    # stack per-layer weights so the whole WaveNet stack runs in one kernel
    wg_all = jnp.stack([lp["w_gate"] for lp in params["layers"]])     # (L,G,3R+A)
    bg_all = jnp.stack([lp["b_gate"] for lp in params["layers"]])     # (L,G,1)
    wos_all = jnp.stack([lp["w_outskip"] for lp in params["layers"]])  # (L,R+S,G2)
    bos_all = jnp.stack([lp["b_outskip"] for lp in params["layers"]])  # (L,R+S,1)
    dil = tuple(int(lp["dilation"]) for lp in params["layers"])
    dmax = max(dil)

    # TODO(synk): cast matmul operands to bf16 on v6e/v7x (keep f32 accumulate)
    # after tolerance validation against the torch reference.
    y = pl.pallas_call(
        partial(_generator_kernel, dilations=dil, dmax=dmax, acw=acw,
                skip_scale=float(math.sqrt(1.0 / L))),
        grid=(1,),
        in_specs=[
            _fs((A, F)), _fs((1, T)), _fs((A, Kc * A)), _fs((F, T)),
            _fs((R, 1)), _fs((R, 1)),
            _fs((L, G, 3 * R + A)), _fs((L, G, 1)),
            _fs((L, R + S, G2)), _fs((L, R + S, 1)),
            _fs((S, S)), _fs((S, 1)), _fs((1, S)), _fs((1, 1)),
        ],
        out_specs=_fs((1, T)),
        out_shape=jax.ShapeDtypeStruct((1, T), jnp.float32),
        scratch_shapes=[
            pltpu.VMEM((A, F + 2 * acw), jnp.float32),     # edge-padded mel
            pltpu.VMEM((Kc * A, F), jnp.float32),          # context-stacked mel
            pltpu.VMEM((3 * R + A, T), jnp.float32),       # [x(t-d);x;x(t+d);c]
            pltpu.VMEM((R, T + 2 * dmax), jnp.float32),    # zero-halo'd x
            pltpu.VMEM((S, T), jnp.float32),               # skip accumulator
        ],
        compiler_params=_CP_SEQ,
    )(mel_cm, noise, params["conv_in_w"], upT,
      params["first_w"], params["first_b"],
      wg_all, bg_all, wos_all, bos_all,
      params["last_w1"], params["last_b1"], params["last_w2"], params["last_b2"])
    return y[0]                                            # (T,) == .view(-1)


# ----------------------------- full defense forward --------------------------
def pwgan_defense_forward(x, params, noise_key):
    x24 = resample_pallas(x, 16000, 24000)                        # pre_resample
    mel_cm = log_mel_feature(x24, params["mean"], params["scale"])  # (A, nf)
    T = int(mel_cm.shape[1]) * UPSAMPLE_FACTOR
    # TODO(synk): torch.randn inference noise replaced by deterministic jax PRNG.
    noise = jax.random.normal(noise_key, (1, T), dtype=jnp.float32)
    y = generator_inference(mel_cm, noise, params)                # model.inference
    out = resample_pallas(y, 24000, 16000)                        # post_resample
    return out[None, :]                                           # unsqueeze(0)


# ----------------------------- deterministic synthetic parameters ------------
# TODO(synk): checkpoint loading + remove_weight_norm replaced by synthetic params.
def init_params(key):
    ks = list(jax.random.split(key, 64))
    it = iter(ks)

    def nrm(shape, s=0.1):
        return s * jax.random.normal(next(it), shape, dtype=jnp.float32)

    A, R, G, S = NUM_MELS, RESIDUAL_CHANNELS, GATE_CHANNELS, SKIP_CHANNELS
    G2 = G // 2
    Kc = 2 * AUX_CONTEXT_WINDOW + 1
    params = dict(
        mean=jnp.full((A, 1), -4.0, jnp.float32),       # register_stats buffers
        scale=jnp.full((A, 1), 2.0, jnp.float32),
        conv_in_w=nrm((A, Kc * A)),                     # [out, tap*A+in] layout
        upsample_ws=[tuple(1.0 / (2 * s + 1) for _ in range(2 * s + 1))
                     for s in UPSAMPLE_SCALES],
        first_w=nrm((R, 1)), first_b=nrm((R, 1)),
        last_w1=nrm((S, S)), last_b1=nrm((S, 1)),
        last_w2=nrm((1, S)), last_b2=nrm((1, 1)),
        layers=[],
    )
    lps = LAYERS // STACKS
    for layer in range(LAYERS):
        d = 2 ** (layer % lps)
        params["layers"].append(dict(
            dilation=d,
            # fused gate weight: columns = [x(t-d) | x(t) | x(t+d) | aux]
            w_gate=nrm((G, 3 * R + A)), b_gate=nrm((G, 1)),
            # fused [out ; skip] 1x1 conv
            w_outskip=nrm((R + S, G2)), b_outskip=nrm((R + S, 1)),
        ))
    return params


# ----------------------------- main -------------------------------------------
if __name__ == "__main__":
    key = jax.random.PRNGKey(0)
    k_in, k_par, k_noise = jax.random.split(key, 3)
    x = 0.5 * jax.random.normal(k_in, (512,), dtype=jnp.float32)  # 16 kHz waveform
    params = init_params(k_par)

    out = pwgan_defense_forward(x, params, k_noise)
    out = jax.block_until_ready(out)

    assert out.ndim == 2 and out.shape[0] == 1, out.shape
    assert bool(jnp.all(jnp.isfinite(out))), "non-finite output"
    print("KERNEL_OK")
</pallas_src>

<mosaic_0001>
module attributes {stable_mosaic.version = 11 : i64} {
  func.func @_resample_kernel(%arg0: i32, %arg1: memref<16x512xf32, #tpu.memory_space<vmem>>, %arg2: memref<3x16xf32, #tpu.memory_space<vmem>>, %arg3: memref<3x512xf32, #tpu.memory_space<vmem>>) attributes {dimension_semantics = [#tpu.dimension_semantics<parallel>], iteration_bounds = array<i64: 1>, scalar_prefetch = 0 : i64, scratch_operands = 0 : i64, tpu.core_type = #tpu.core_type<tc>, window_params = [{transform_indices = @transform_0, window_bounds = array<i64: 16, 512>}, {pipeline_mode = #tpu.pipeline_mode<synchronous>, transform_indices = @transform_1, window_bounds = array<i64: 3, 16>}, {transform_indices = @transform_2, window_bounds = array<i64: 3, 512>}]} {
    %c0 = arith.constant 0 : index
    %c0_0 = arith.constant 0 : index
    %0 = vector.load %arg2[%c0, %c0_0] : memref<3x16xf32, #tpu.memory_space<vmem>>, vector<3x16xf32>
    %c0_1 = arith.constant 0 : index
    %c0_2 = arith.constant 0 : index
    %1 = vector.load %arg1[%c0_1, %c0_2] : memref<16x512xf32, #tpu.memory_space<vmem>>, vector<16x512xf32>
    %cst = arith.constant dense<0.000000e+00> : vector<3x512xf32>
    %2 = tpu.matmul %0, %1, %cst {dimension_numbers = #tpu.dot_dimension_numbers<[1], [0], [0], [1], [0, 0, 1, 1], [], []>} : vector<3x16xf32>, vector<16x512xf32>, vector<3x512xf32> -> vector<3x512xf32>
    %c0_3 = arith.constant 0 : index
    %c0_4 = arith.constant 0 : index
    %3 = vector.load %arg3[%c0_3, %c0_4] : memref<3x512xf32, #tpu.memory_space<vmem>>, vector<3x512xf32>
    tpu.vector_store %arg3[%c0_3, %c0_4], %2 {strides = array<i32>} : memref<3x512xf32, #tpu.memory_space<vmem>>, vector<3x512xf32>,
    return
  }
  func.func @transform_0(%arg0: i32) -> (i32, i32) {
    %c0_i32 = arith.constant 0 : i32
    %c0_i32_0 = arith.constant 0 : i32
    return %c0_i32, %arg0 : i32, i32
  }
  func.func @transform_1(%arg0: i32) -> (i32, i32) {
    %c0_i32 = arith.constant 0 : i32
    %c0_i32_0 = arith.constant 0 : i32
    %c0_i32_1 = arith.constant 0 : i32
    return %c0_i32, %c0_i32_0 : i32, i32
  }
  func.func @transform_2(%arg0: i32) -> (i32, i32) {
    %c0_i32 = arith.constant 0 : i32
    %c0_i32_0 = arith.constant 0 : i32
    return %c0_i32, %arg0 : i32, i32
  }
}

</mosaic_0001>

<llo_original>
// kernel: tpu_custom_call.1
$region0: #{tpu_custom_call.1}
  #allocation0 [shape = 'u32[]', space=smem, size = 0x4, offset = 0x4, fixed_abs, tag = 'smem constant byte address 0x4 - core index']
  #allocation1 [shape = 'u32[72,128]{1,0:T(1,128)}', space=vmem, size = 0x9000, scoped, tag = 'internal scratch']
  %s0 = inlined_call_operand.hbm [shape: f32[16,512], index: 0, kind: input, shape index: {}]
  %s1 = inlined_call_operand.hbm [shape: f32[3,16], index: 1, kind: input, shape index: {}]
  %s2 = inlined_call_operand.hbm [shape: f32[3,512], index: 2, kind: output, shape index: {}]
  %s3 = sld [smem:[#allocation0]]
  $region26: #{tpu_custom_call.1} parent=0
    _
  %s5 = ssub.s32 1, %s3
  %s6 = scalar_select 0, %s5, %s3
  $region1: #{tpu_custom_call.1} parent=0
    #allocation2 [shape = 'u8[32768]{0}', space=vmem, size = 0x8000, scoped, tag = 'input window, operand 0, single buffered']
    #allocation3 [shape = 's32[1]{0}', space=sflag, size = 0x4, scoped, tag = 'scoped memory for tpu_custom_call.1']
    #allocation4 [shape = 's32[1]{0}', space=sflag, size = 0x4, scoped, tag = 'scoped memory for tpu_custom_call.1']
    #allocation5 [shape = 'u8[2048]{0}', space=vmem, size = 0x800, scoped, tag = 'input window, operand 1, single buffered']
    #allocation6 [shape = 's32[1]{0}', space=sflag, size = 0x4, scoped, tag = 'scoped memory for tpu_custom_call.1']
    #allocation7 [shape = 'u8[8192]{0}', space=vmem, size = 0x2000, scoped, tag = 'output window, operand 0, single buffered']
    %7 = vsyncpa [#allocation3], 0
    %8 = vsyncpa [#allocation6], 0
    %9 = vsyncpa [#allocation4], 0
    // Predicated region
    $region2: #{tpu_custom_call.1} parent=1 // pred_check
      _
    $region3: #{tpu_custom_call.1} parent=1 // pred_check_branch
      %11 = sbr.rel (0) target = $region5
    $region4: #{tpu_custom_call.1} parent=1 // pred_region
      %13 = vsyncadd [#allocation3], 0
      %s14 = sshll.u32 %s0, 4
      %s15 = int_to_ptr.hbm [resolvable:$true] %s14
      %s16 = sshll.u32 [#allocation2], 4
      %s17 = int_to_ptr.vmem [resolvable:$true] %s16
      %22 = dma.hbm_to_vmem [thread:$0]  %s15, 1024, %s17, [#allocation3], 512, 512, 32
    $region5: #{tpu_custom_call.1} parent=1 // pred_fallthru
      _
    // Predicated region
    $region6: #{tpu_custom_call.1} parent=1 // pred_check
      _
    $region7: #{tpu_custom_call.1} parent=1 // pred_check_branch
      %24 = sbr.rel (0) target = $region9
    $region8: #{tpu_custom_call.1} parent=1 // pred_region
      %26 = vsyncadd [#allocation6], 0
      %s28 = sshll.u32 %s1, 4
      %s29 = int_to_ptr.hbm [resolvable:$true] %s28
      %s30 = sshll.u32 [#allocation5], 4
      %s31 = int_to_ptr.vmem [resolvable:$true] %s30
      %33 = dma.hbm_to_vmem [thread:$0]  %s29, 64, %s31, [#allocation6]
    $region9: #{tpu_custom_call.1} parent=1 // pred_fallthru
      _
    // Predicated region
    $region10: #{tpu_custom_call.1} parent=1 // pred_check
      _
    $region11: #{tpu_custom_call.1} parent=1 // pred_check_branch
      %35 = sbr.rel (0) target = $region13
    $region12: #{tpu_custom_call.1} parent=1 // pred_region
      %37 = dma.done [#allocation3], 1024
    $region13: #{tpu_custom_call.1} parent=1 // pred_fallthru
      _
    // Predicated region
    $region14: #{tpu_custom_call.1} parent=1 // pred_check
      _
    $region15: #{tpu_custom_call.1} parent=1 // pred_check_branch
      %39 = sbr.rel (0) target = $region17
    $region16: #{tpu_custom_call.1} parent=1 // pred_region
      %41 = dma.done [#allocation6], 64
    $region17: #{tpu_custom_call.1} parent=1 // pred_fallthru
      _
    %v42 = vld [vmem:[#allocation5] sm:$0x7]
    %v43 = vld [vmem:[#allocation2] sm:$0xff]
    %v44 = vld [vmem:[#allocation2 + $0x8] sm:$0xff]
    %v45 = vld [vmem:[#allocation2 + $0x10] sm:$0xff]
    %v46 = vld [vmem:[#allocation2 + $0x18] sm:$0xff]
    %v47 = vld [vmem:[#allocation2 + $0x20] sm:$0xff]
    %v48 = vld [vmem:[#allocation2 + $0x28] sm:$0xff]
    %v49 = vld [vmem:[#allocation2 + $0x30] sm:$0xff]
    %v50 = vld [vmem:[#allocation2 + $0x38] sm:$0xff]
    %vm51 = vcmask 130048
    %v53 = vsel %vm51, %v42, 0
    %55 = vmatpush.msra.mxu0 0.0
    %56 = vmatpush.msra.mxu0 0.0
    %57 = vmatpush.msra.mxu0 0.0
    %58 = vmatpush.msra.mxu0 0.0
    %59 = vmatpush.msra.mxu0 0.0
    %60 = vmatpush.msra.mxu0 0.0
    %61 = vmatpush.msra.mxu0 0.0
    %62 = vmatpush.msra.mxu0 0.0
    %63 = vmatpush.msra.mxu0 0.0
    %64 = vmatpush.msra.mxu0 0.0
    %65 = vmatpush.msra.mxu0 0.0
    %66 = vmatpush.msra.mxu0 0.0
    %67 = vmatpush.msra.mxu0 0.0
    %68 = vmatpush.msra.mxu0 0.0
    %69 = vmatpush.msra.mxu0 %v47
    %70 = vmatpush.msra.mxu0 %v43
    %71 = vmatmul.f32.gmra.mxu0 %v53
    %v72 = vpop.f32.mrf.mxu0
    %v73 = vadd.f32 0.0, %v72
    %74 = vdwg.mxu0
    %75 = vmatpush.msra.mxu0 0.0
    %76 = vmatpush.msra.mxu0 0.0
    %77 = vmatpush.msra.mxu0 0.0
    %78 = vmatpush.msra.mxu0 0.0
    %79 = vmatpush.msra.mxu0 0.0
    %80 = vmatpush.msra.mxu0 0.0
    %81 = vmatpush.msra.mxu0 0.0
    %82 = vmatpush.msra.mxu0 0.0
    %83 = vmatpush.msra.mxu0 0.0
    %84 = vmatpush.msra.mxu0 0.0
    %85 = vmatpush.msra.mxu0 0.0
    %86 = vmatpush.msra.mxu0 0.0
    %87 = vmatpush.msra.mxu0 0.0
    %88 = vmatpush.msra.mxu0 0.0
    %89 = vmatpush.msra.mxu0 %v48
    %90 = vmatpush.msra.mxu0 %v44
    %91 = vmatmul.f32.gmra.mxu0 %v53
    %v92 = vpop.f32.mrf.mxu0
    %v93 = vadd.f32 0.0, %v92
    %94 = vdwg.mxu0
    %95 = vmatpush.msra.mxu0 0.0
    %96 = vmatpush.msra.mxu0 0.0
    %97 = vmatpush.msra.mxu0 0.0
    %98 = vmatpush.msra.mxu0 0.0
    %99 = vmatpush.msra.mxu0 0.0
    %100 = vmatpush.msra.mxu0 0.0
    %101 = vmatpush.msra.mxu0 0.0
    %102 = vmatpush.msra.mxu0 0.0
    %103 = vmatpush.msra.mxu0 0.0
    %104 = vmatpush.msra.mxu0 0.0
    %105 = vmatpush.msra.mxu0 0.0
    %106 = vmatpush.msra.mxu0 0.0
    %107 = vmatpush.msra.mxu0 0.0
    %108 = vmatpush.msra.mxu0 0.0
    %109 = vmatpush.msra.mxu0 %v49
    %110 = vmatpush.msra.mxu0 %v45
    %111 = vmatmul.f32.gmra.mxu0 %v53
    %v112 = vpop.f32.mrf.mxu0
    %v113 = vadd.f32 0.0, %v112
    %114 = vdwg.mxu0
    %115 = vmatpush.msra.mxu0 0.0
    %116 = vmatpush.msra.mxu0 0.0
    %117 = vmatpush.msra.mxu0 0.0
    %118 = vmatpush.msra.mxu0 0.0
    %119 = vmatpush.msra.mxu0 0.0
    %120 = vmatpush.msra.mxu0 0.0
    %121 = vmatpush.msra.mxu0 0.0
    %122 = vmatpush.msra.mxu0 0.0
    %123 = vmatpush.msra.mxu0 0.0
    %124 = vmatpush.msra.mxu0 0.0
    %125 = vmatpush.msra.mxu0 0.0
    %126 = vmatpush.msra.mxu0 0.0
    %127 = vmatpush.msra.mxu0 0.0
    %128 = vmatpush.msra.mxu0 0.0
    %129 = vmatpush.msra.mxu0 %v50
    %130 = vmatpush.msra.mxu0 %v46
    %131 = vmatmul.f32.gmra.mxu0 %v53
    %v132 = vpop.f32.mrf.mxu0
    %v133 = vadd.f32 0.0, %v132
    %134 = vdwg.mxu0
    %v139 = vrot.slane %v93, 4
    %v140 = vrot.slane %v133, 4
    %vm141 = vcmask 1043456
    %v142 = vsel %vm141, %v73, %v139
    %v143 = vsel %vm141, %v113, %v140
    %146 = vst [vmem:[#allocation7] sm:$0x77] %v142
    %147 = vst [vmem:[#allocation7 + $0x8] sm:$0x77] %v143
    // Predicated region
    $region18: #{tpu_custom_call.1} parent=1 // pred_check
      _
    $region19: #{tpu_custom_call.1} parent=1 // pred_check_branch
      %149 = sbr.rel (0) target = $region21
    $region20: #{tpu_custom_call.1} parent=1 // pred_region
      %151 = vsyncadd [#allocation4], 0
      %s153 = sshll.u32 [#allocation7], 4
      %s154 = int_to_ptr.vmem [resolvable:$true] %s153
      %s155 = sshll.u32 %s2, 4
      %s156 = int_to_ptr.hbm [resolvable:$true] %s155
      %158 = dma.vmem_to_hbm [thread:$0]  %s154, 256, %s156, [#allocation4]
    $region21: #{tpu_custom_call.1} parent=1 // pred_fallthru
      _
    // Predicated region
    $region22: #{tpu_custom_call.1} parent=1 // pred_check
      _
    $region23: #{tpu_custom_call.1} parent=1 // pred_check_branch
      %160 = sbr.rel (0) target = $region25
    $region24: #{tpu_custom_call.1} parent=1 // pred_region
      %162 = dma.done [#allocation4], 256
    $region25: #{tpu_custom_call.1} parent=1 // pred_fallthru
      _
    %163 = vsyncpa [#allocation3], 1
    %164 = vsyncpa [#allocation6], 1
    %165 = vsyncpa [#allocation4], 1

</llo_original>
